<compile_context>
chip_gen: v7x
topology: tpu7x:2x2x1
jax: 0.10.0
libtpu: 0.0.40
codegen_flags: <defaults>
</compile_context>

<pallas_src>
import functools

import jax
import jax.numpy as jnp
from jax import lax
from jax.experimental import pallas as pl
from jax.experimental.pallas import tpu as pltpu


def _fc_stats_kernel(x_ref, w1b_ref, h_ref, stats_ref, *, in_features, neg_slope):
    """fc1 + LeakyReLU for one row tile; emits per-tile BN partial stats."""
    w = w1b_ref[0:in_features, :]                        # [IN, H]
    b = w1b_ref[in_features:in_features + 1, :]          # [1, H] (bias row)
    h = jnp.dot(x_ref[...], w, preferred_element_type=jnp.float32) + b
    h = jnp.where(h >= 0.0, h, neg_slope * h)            # LeakyReLU(0.2)
    h_ref[...] = h
    # Partial statistics for global BatchNorm (reduced across tiles in wrapper).
    stats_ref[0:1, :] = jnp.sum(h, axis=0, keepdims=True)
    stats_ref[1:2, :] = jnp.sum(h * h, axis=0, keepdims=True)


def _bn_dist_softmax_kernel(params_ref, h_ref, centers_ref,
                            x1_ref, negdist_ref, out_ref, *,
                            hidden, n_classes, inv_scale):
    """Folded BN affine + prototype (squared-Euclidean) distance + softmax."""
    a = params_ref[0:1, 0:hidden]        # gamma * rsqrt(var + eps)
    b = params_ref[1:2, 0:hidden]        # beta - mean * a
    csq = params_ref[2:3, 0:n_classes]   # ||centers||^2, precomputed [1, C]

    x1 = h_ref[...] * a + b              # BatchNorm1d (training-mode, folded)
    x1_ref[...] = x1

    # -dist = 2 * x1 @ c^T - ||x1||^2 - ||c||^2   (no transposes: contract (1,1))
    fic = 2.0 * lax.dot_general(x1, centers_ref[...],
                                (((1,), (1,)), ((), ())),
                                preferred_element_type=jnp.float32)   # [tb, C]
    feat_sq = jnp.sum(x1 * x1, axis=1, keepdims=True)                 # [tb, 1]
    neg = fic - feat_sq - csq
    negdist_ref[...] = neg

    # softmax(neg / scale, axis=1)
    logits = neg * inv_scale
    m = jnp.max(logits, axis=1, keepdims=True)
    e = jnp.exp(logits - m)
    out_ref[...] = e * pl.reciprocal(jnp.sum(e, axis=1, keepdims=True), approx=False)


def pronet_forward(x, w1, b1, gamma, beta, centers, *,
                   scale=0.1, bn_eps=1e-5, block_b=256):
    B, IN = x.shape
    C, H = centers.shape
    P = max(H, C)

    tb = B if B <= block_b else block_b
    assert B % tb == 0, "batch must be divisible by the row-tile size"
    n_tiles = B // tb

    parallel = pltpu.CompilerParams(dimension_semantics=("parallel",))

    # ---- pass 1: fc1 + LeakyReLU, per-tile partial BN stats ----
    w1b = jnp.concatenate([w1, b1.reshape(1, H)], axis=0)   # bias folded -> [IN+1, H]
    h, stats = pl.pallas_call(
        functools.partial(_fc_stats_kernel, in_features=IN, neg_slope=0.2),
        out_shape=(jax.ShapeDtypeStruct((B, H), jnp.float32),
                   jax.ShapeDtypeStruct((n_tiles, 2, H), jnp.float32)),
        grid=(n_tiles,),
        in_specs=[pl.BlockSpec((tb, IN), lambda i: (i, 0)),
                  pl.BlockSpec((IN + 1, H), lambda i: (0, 0))],
        out_specs=(pl.BlockSpec((tb, H), lambda i: (i, 0)),
                   pl.BlockSpec((None, 2, H), lambda i: (i, 0, 0))),
        compiler_params=parallel,
    )(x, w1b)

    # ---- tiny global reductions / parameter folding (negligible XLA work) ----
    s = jnp.sum(stats, axis=0)                                # [2, H]
    mean = s[0] / B
    var = jnp.maximum(s[1] / B - mean * mean, 0.0)            # biased batch variance
    a = gamma * lax.rsqrt(var + bn_eps)                       # [H]
    b = beta - mean * a                                       # [H]
    cent_sq = jnp.sum(centers * centers, axis=1)              # [C]

    params = jnp.zeros((3, P), jnp.float32)
    params = params.at[0, :H].set(a).at[1, :H].set(b).at[2, :C].set(cent_sq)

    # ---- pass 2: folded BN + prototype distance + softmax ----
    x1, neg_dist, out = pl.pallas_call(
        functools.partial(_bn_dist_softmax_kernel, hidden=H, n_classes=C,
                          inv_scale=1.0 / scale),
        out_shape=(jax.ShapeDtypeStruct((B, H), jnp.float32),   # x1
                   jax.ShapeDtypeStruct((B, C), jnp.float32),   # -dist
                   jax.ShapeDtypeStruct((B, C), jnp.float32)),  # softmax
        grid=(n_tiles,),
        in_specs=[pl.BlockSpec((3, P), lambda i: (0, 0)),
                  pl.BlockSpec((tb, H), lambda i: (i, 0)),
                  pl.BlockSpec((C, H), lambda i: (0, 0))],
        out_specs=(pl.BlockSpec((tb, H), lambda i: (i, 0)),
                   pl.BlockSpec((tb, C), lambda i: (i, 0)),
                   pl.BlockSpec((tb, C), lambda i: (i, 0))),
        compiler_params=parallel,
    )(params, h, centers)

    # centers is a pure passthrough in the PyTorch module.
    # TODO(synk): BatchNorm running_mean/running_var buffers are not updated
    # (only the forward outputs are produced, matching the requested forward pass).
    return x1, centers, neg_dist, out


def _reference(x, w1, b1, gamma, beta, centers, scale=0.1):
    h = x @ w1 + b1
    h = jnp.where(h >= 0, h, 0.2 * h)
    mean = jnp.mean(h, axis=0, keepdims=True)
    var = jnp.mean((h - mean) ** 2, axis=0, keepdims=True)
    h = (h - mean) / jnp.sqrt(var + 1e-5) * gamma + beta
    feat_sq = jnp.sum(h ** 2, axis=1, keepdims=True)
    cent_sq = jnp.sum(centers ** 2, axis=1, keepdims=True).T
    dist = feat_sq + cent_sq - 2.0 * h @ centers.T
    neg = -dist
    out = jax.nn.softmax(neg / scale, axis=1)
    return h, centers, neg, out


if __name__ == "__main__":
    B = 8           # batch
    IN = 64         # nn.Linear(64, ...)
    H = 16          # num_hidden_units
    C = 10          # num_classes

    key = jax.random.PRNGKey(0)
    kx, kw, kb, kc = jax.random.split(key, 4)

    x = jax.random.normal(kx, (B, IN), dtype=jnp.float32)

    # fc1 Linear params (deterministic synthetic init, torch-like scaling)
    w1 = jax.random.normal(kw, (IN, H), dtype=jnp.float32) * (1.0 / jnp.sqrt(IN))
    b1 = jax.random.normal(kb, (H,), dtype=jnp.float32) * (1.0 / jnp.sqrt(IN))
    # BatchNorm1d affine params (torch defaults: gamma=1, beta=0)
    gamma = jnp.ones((H,), dtype=jnp.float32)
    beta = jnp.zeros((H,), dtype=jnp.float32)
    # dce centers: kaiming_normal_ -> std = sqrt(2 / fan_in), fan_in = H
    centers = jax.random.normal(kc, (C, H), dtype=jnp.float32) * jnp.sqrt(2.0 / H)

    x1, cen, neg_dist, out = pronet_forward(x, w1, b1, gamma, beta, centers, scale=0.1)
    jax.block_until_ready((x1, cen, neg_dist, out))

    # Correctness check against pure-JAX reference.
    r_x1, r_cen, r_neg, r_out = _reference(x, w1, b1, gamma, beta, centers)
    assert jnp.allclose(x1, r_x1, atol=1e-4, rtol=1e-4)
    assert jnp.allclose(neg_dist, r_neg, atol=1e-3, rtol=1e-4)
    assert jnp.allclose(out, r_out, atol=1e-4, rtol=1e-4)
    assert out.shape == (B, C) and x1.shape == (B, H) and cen.shape == (C, H)

    print("KERNEL_OK")
</pallas_src>

<mosaic_0001>
module attributes {stable_mosaic.version = 11 : i64} {
  func.func @_fc_stats_kernel(%arg0: i32, %arg1: memref<8x64xf32, #tpu.memory_space<vmem>>, %arg2: memref<65x16xf32, #tpu.memory_space<vmem>>, %arg3: memref<8x16xf32, #tpu.memory_space<vmem>>, %arg4: memref<1x2x16xf32, #tpu.memory_space<vmem>>) attributes {dimension_semantics = [#tpu.dimension_semantics<parallel>], iteration_bounds = array<i64: 1>, scalar_prefetch = 0 : i64, scratch_operands = 0 : i64, tpu.core_type = #tpu.core_type<tc>, window_params = [{transform_indices = @transform_0, window_bounds = array<i64: 8, 64>}, {pipeline_mode = #tpu.pipeline_mode<synchronous>, transform_indices = @transform_1, window_bounds = array<i64: 65, 16>}, {transform_indices = @transform_2, window_bounds = array<i64: 8, 16>}, {transform_indices = @transform_3, window_bounds = array<i64: 1, 2, 16>}]} {
    %c0 = arith.constant 0 : index
    %c0_0 = arith.constant 0 : index
    %0 = vector.load %arg2[%c0, %c0_0] : memref<65x16xf32, #tpu.memory_space<vmem>>, vector<64x16xf32>
    %c64 = arith.constant 64 : index
    %c0_1 = arith.constant 0 : index
    %1 = vector.load %arg2[%c64, %c0_1] : memref<65x16xf32, #tpu.memory_space<vmem>>, vector<1x16xf32>
    %c0_2 = arith.constant 0 : index
    %c0_3 = arith.constant 0 : index
    %2 = vector.load %arg1[%c0_2, %c0_3] : memref<8x64xf32, #tpu.memory_space<vmem>>, vector<8x64xf32>
    %cst = arith.constant dense<0.000000e+00> : vector<8x16xf32>
    %3 = tpu.matmul %2, %0, %cst {dimension_numbers = #tpu.dot_dimension_numbers<[1], [0], [0], [1], [0, 0, 1, 1], [], []>} : vector<8x64xf32>, vector<64x16xf32>, vector<8x16xf32> -> vector<8x16xf32>
    %4 = vector.broadcast %1 : vector<1x16xf32> to vector<8x16xf32>
    %5 = arith.addf %3, %4 : vector<8x16xf32>
    %cst_4 = arith.constant 0.000000e+00 : f32
    %6 = vector.broadcast %cst_4 : f32 to vector<8x16xf32>
    %7 = arith.cmpf oge, %5, %6 : vector<8x16xf32>
    %cst_5 = arith.constant 2.000000e-01 : f32
    %8 = vector.broadcast %cst_5 : f32 to vector<8x16xf32>
    %9 = arith.mulf %8, %5 : vector<8x16xf32>
    %10 = arith.select %7, %5, %9 : vector<8x16xi1>, vector<8x16xf32>
    %c0_6 = arith.constant 0 : index
    %c0_7 = arith.constant 0 : index
    %11 = vector.load %arg3[%c0_6, %c0_7] : memref<8x16xf32, #tpu.memory_space<vmem>>, vector<8x16xf32>
    tpu.vector_store %arg3[%c0_6, %c0_7], %10 {strides = array<i32>} : memref<8x16xf32, #tpu.memory_space<vmem>>, vector<8x16xf32>,
    %cst_8 = arith.constant dense<0.000000e+00> : vector<16xf32>
    %12 = vector.multi_reduction <add>, %10, %cst_8 [0] : vector<8x16xf32> to vector<16xf32>
    %13 = vector.shape_cast %12 : vector<16xf32> to vector<1x16xf32>
    %c0_9 = arith.constant 0 : index
    %c0_10 = arith.constant 0 : index
    %c0_11 = arith.constant 0 : index
    %14 = vector.load %arg4[%c0_9, %c0_10, %c0_11] : memref<1x2x16xf32, #tpu.memory_space<vmem>>, vector<1x1x16xf32>
    %15 = vector.shape_cast %14 : vector<1x1x16xf32> to vector<1x16xf32>
    %16 = vector.shape_cast %13 : vector<1x16xf32> to vector<1x1x16xf32>
    tpu.vector_store %arg4[%c0_9, %c0_10, %c0_11], %16 {strides = array<i32>} : memref<1x2x16xf32, #tpu.memory_space<vmem>>, vector<1x1x16xf32>,
    %17 = arith.mulf %10, %10 : vector<8x16xf32>
    %cst_12 = arith.constant dense<0.000000e+00> : vector<16xf32>
    %18 = vector.multi_reduction <add>, %17, %cst_12 [0] : vector<8x16xf32> to vector<16xf32>
    %19 = vector.shape_cast %18 : vector<16xf32> to vector<1x16xf32>
    %c0_13 = arith.constant 0 : index
    %c1 = arith.constant 1 : index
    %c0_14 = arith.constant 0 : index
    %20 = vector.load %arg4[%c0_13, %c1, %c0_14] : memref<1x2x16xf32, #tpu.memory_space<vmem>>, vector<1x1x16xf32>
    %21 = vector.shape_cast %20 : vector<1x1x16xf32> to vector<1x16xf32>
    %22 = vector.shape_cast %19 : vector<1x16xf32> to vector<1x1x16xf32>
    tpu.vector_store %arg4[%c0_13, %c1, %c0_14], %22 {strides = array<i32>} : memref<1x2x16xf32, #tpu.memory_space<vmem>>, vector<1x1x16xf32>,
    return
  }
  func.func @transform_0(%arg0: i32) -> (i32, i32) {
    %c0_i32 = arith.constant 0 : i32
    %c0_i32_0 = arith.constant 0 : i32
    return %arg0, %c0_i32 : i32, i32
  }
  func.func @transform_1(%arg0: i32) -> (i32, i32) {
    %c0_i32 = arith.constant 0 : i32
    %c0_i32_0 = arith.constant 0 : i32
    %c0_i32_1 = arith.constant 0 : i32
    return %c0_i32, %c0_i32_0 : i32, i32
  }
  func.func @transform_2(%arg0: i32) -> (i32, i32) {
    %c0_i32 = arith.constant 0 : i32
    %c0_i32_0 = arith.constant 0 : i32
    return %arg0, %c0_i32 : i32, i32
  }
  func.func @transform_3(%arg0: i32) -> (i32, i32, i32) {
    %c0_i32 = arith.constant 0 : i32
    %c0_i32_0 = arith.constant 0 : i32
    %c0_i32_1 = arith.constant 0 : i32
    return %arg0, %c0_i32, %c0_i32_0 : i32, i32, i32
  }
}

</mosaic_0001>

<llo_original>
// kernel: tpu_custom_call.1
$region0: #{tpu_custom_call.1}
  #allocation0 [shape = 'u32[]', space=smem, size = 0x4, offset = 0x4, fixed_abs, tag = 'smem constant byte address 0x4 - core index']
  #allocation1 [shape = 'u32[144,128]{1,0:T(1,128)}', space=vmem, size = 0x12000, scoped, tag = 'internal scratch']
  %s0 = inlined_call_operand.vmem [shape: f32[8,64], index: 0, kind: input, shape index: {}]
  %s1 = inlined_call_operand.vmem [shape: f32[65,16], index: 1, kind: input, shape index: {}]
  %s2 = inlined_call_operand.hbm [shape: f32[8,16], index: 2, kind: output, shape index: {0}]
  %s3 = inlined_call_operand.hbm [shape: f32[1,2,16], index: 3, kind: output, shape index: {1}]
  %4 = xla_tuple %s2, %s3
  %s5 = sld [smem:[#allocation0]]
  $region26: #{tpu_custom_call.1} parent=0
    _
  %s7 = ssub.s32 1, %s5
  %s8 = scalar_select 0, %s7, %s5
  $region1: #{tpu_custom_call.1} parent=0
    #allocation2 [shape = 'u8[4096]{0}', space=vmem, size = 0x1000, scoped, tag = 'output window, operand 0, single buffered']
    #allocation3 [shape = 's32[1]{0}', space=sflag, size = 0x4, scoped, tag = 'scoped memory for tpu_custom_call.1']
    #allocation4 [shape = 'u8[1024]{0}', space=vmem, size = 0x400, scoped, tag = 'output window, operand 1, single buffered']
    #allocation5 [shape = 's32[1]{0}', space=sflag, size = 0x4, scoped, tag = 'scoped memory for tpu_custom_call.1']
    %9 = vsyncpa [#allocation3], 0
    %10 = vsyncpa [#allocation5], 0
    // Predicated region
    $region2: #{tpu_custom_call.1} parent=1 // pred_check
      _
    $region3: #{tpu_custom_call.1} parent=1 // pred_check_branch
      %12 = sbr.rel (0) target = $region5
    $region4: #{tpu_custom_call.1} parent=1 // pred_region
      _
    $region5: #{tpu_custom_call.1} parent=1 // pred_fallthru
      _
    // Predicated region
    $region6: #{tpu_custom_call.1} parent=1 // pred_check
      _
    $region7: #{tpu_custom_call.1} parent=1 // pred_check_branch
      %14 = sbr.rel (0) target = $region9
    $region8: #{tpu_custom_call.1} parent=1 // pred_region
      _
    $region9: #{tpu_custom_call.1} parent=1 // pred_fallthru
      _
    %v15 = vld [vmem:[%s1] sm:$0xff]
    %v16 = vld [vmem:[%s1 + $0x8] sm:$0xff]
    %v17 = vld [vmem:[%s1 + $0x10] sm:$0xff]
    %v18 = vld [vmem:[%s1 + $0x18] sm:$0xff]
    %v19 = vld [vmem:[%s1 + $0x20] sm:$0xff]
    %v20 = vld [vmem:[%s1 + $0x28] sm:$0xff]
    %v21 = vld [vmem:[%s1 + $0x30] sm:$0xff]
    %v22 = vld [vmem:[%s1 + $0x38] sm:$0xff]
    %v23 = vld [vmem:[%s1 + $0x40] sm:$0x1]
    %v24 = vld [vmem:[%s0] sm:$0xff]
    %v25 = vlaneseq
    %v26 = vshrl.u32 %v25, 7
    %v27 = vsub.s32 0, %v26
    %v28 = vrot.slane %v23, %v27
    %vm29 = vcmask 523264
    %v31 = vsel %vm29, %v24, 0
    %33 = vmatprep.subr.mxu0 0.0
    %34 = vmatpush1.msra.mxu0 %v15
    %35 = vmatprep.subr.mxu0 0.0
    %36 = vmatpush1.msra.mxu0 %v16
    %37 = vmatprep.subr.mxu0 0.0
    %38 = vmatpush1.msra.mxu0 %v17
    %39 = vmatprep.subr.mxu0 0.0
    %40 = vmatpush1.msra.mxu0 %v18
    %41 = vmatprep.subr.mxu0 0.0
    %42 = vmatpush1.msra.mxu0 %v19
    %43 = vmatprep.subr.mxu0 0.0
    %44 = vmatpush1.msra.mxu0 %v20
    %45 = vmatprep.subr.mxu0 0.0
    %46 = vmatpush1.msra.mxu0 %v21
    %47 = vmatprep.subr.mxu0 0.0
    %48 = vmatpush1.msra.mxu0 %v22
    %49 = vmatprep.subr.mxu0 0.0
    %50 = vmatpush1.msra.mxu0 0.0
    %51 = vmatprep.subr.mxu0 0.0
    %52 = vmatpush1.msra.mxu0 0.0
    %53 = vmatprep.subr.mxu0 0.0
    %54 = vmatpush1.msra.mxu0 0.0
    %55 = vmatprep.subr.mxu0 0.0
    %56 = vmatpush1.msra.mxu0 0.0
    %57 = vmatprep.subr.mxu0 0.0
    %58 = vmatpush1.msra.mxu0 0.0
    %59 = vmatprep.subr.mxu0 0.0
    %60 = vmatpush1.msra.mxu0 0.0
    %61 = vmatprep.subr.mxu0 0.0
    %62 = vmatpush1.msra.mxu0 0.0
    %63 = vmatprep.subr.mxu0 0.0
    %64 = vmatpush1.msra.mxu0 0.0
    %65 = vmatprep.subr.mxu0 0.0
    %66 = vmatpush1.msra.mxu0 0.0
    %67 = vmatprep.subr.mxu0 0.0
    %68 = vmatpush1.msra.mxu0 0.0
    %69 = vmatprep.subr.mxu0 0.0
    %70 = vmatpush1.msra.mxu0 0.0
    %71 = vmatprep.subr.mxu0 0.0
    %72 = vmatpush1.msra.mxu0 0.0
    %73 = vmatprep.subr.mxu0 0.0
    %74 = vmatpush1.msra.mxu0 0.0
    %75 = vmatprep.subr.mxu0 0.0
    %76 = vmatpush1.msra.mxu0 0.0
    %77 = vmatprep.subr.mxu0 0.0
    %78 = vmatpush1.msra.mxu0 0.0
    %79 = vmatprep.subr.mxu0 0.0
    %80 = vmatpush1.msra.mxu0 0.0
    %81 = vmatprep.subr.mxu0 0.0
    %82 = vmatpush1.msra.mxu0 0.0
    %83 = vmatprep.subr.mxu0 0.0
    %84 = vmatpush1.msra.mxu0 0.0
    %85 = vmatprep.subr.mxu0 0.0
    %86 = vmatpush1.msra.mxu0 0.0
    %87 = vmatprep.subr.mxu0 0.0
    %88 = vmatpush1.msra.mxu0 0.0
    %89 = vmatprep.subr.mxu0 0.0
    %90 = vmatpush1.msra.mxu0 0.0
    %91 = vmatprep.subr.mxu0 0.0
    %92 = vmatpush1.msra.mxu0 0.0
    %93 = vmatprep.subr.mxu0 0.0
    %94 = vmatpush1.msra.mxu0 0.0
    %95 = vmatprep.subr.mxu0 0.0
    %96 = vmatpush1.msra.mxu0 0.0
    %97 = vmatprep.mubr.f32.mxu0 0.0
    %98 = vmatmul.mubr.f32.gmra.mrb[0].mxu0 %v31
    %v99 = vpop.f32.mrb[0].mxu0
    %v100 = vadd.f32 %v28, %v99
    %v101 = vpop.f32.mrb[0].mxu0
    %102 = vdwg.mxu0
    %vm103 = vcmp.ge.f32.partialorder %v100, 0.0
    %v104 = vmul.f32 %v100, 0.2
    %v105 = vsel %vm103, %v100, %v104
    %vm106 = vcmask 130048
    %107 = vst.msk [vmem:[#allocation2] sm:$0xff] %vm106, %v105
    %v108 = vsel %vm106, %v105, 0.0
    %v109 = vrot.slane %v108, 4
    %v110 = vadd.f32 %v108, %v109
    %v111 = vrot.slane %v110, 2
    %v112 = vadd.f32 %v110, %v111
    %v113 = vrot.slane %v112, 1
    %v114 = vadd.f32 %v112, %v113
    %vm115 = vcmask 122880
    %116 = vst.msk [vmem:[#allocation4] sm:$0x1] %vm115, %v114
    %v117 = vmul.f32 %v105, %v105
    %v118 = vsel %vm106, %v117, 0.0
    %v119 = vrot.slane %v118, 4
    %v120 = vadd.f32 %v118, %v119
    %v121 = vrot.slane %v120, 2
    %v122 = vadd.f32 %v120, %v121
    %v123 = vrot.slane %v122, 1
    %v124 = vadd.f32 %v122, %v123
    %125 = vst.msk [vmem:[#allocation4 + $0x1] sm:$0x1] %vm115, %v124
    // Predicated region
    $region10: #{tpu_custom_call.1} parent=1 // pred_check
      _
    $region11: #{tpu_custom_call.1} parent=1 // pred_check_branch
      %127 = sbr.rel (0) target = $region13
    $region12: #{tpu_custom_call.1} parent=1 // pred_region
      %s129 = ssub.s32 128, 128
      %130 = vsyncadd [#allocation3], %s129
      %s132 = sshll.u32 [#allocation2], 4
      %s133 = int_to_ptr.vmem [resolvable:$true] %s132
      %135 = dma.vmem_to_hbm [thread:$0]  %s133, 128, %s2, [#allocation3]
    $region13: #{tpu_custom_call.1} parent=1 // pred_fallthru
      _
    // Predicated region
    $region14: #{tpu_custom_call.1} parent=1 // pred_check
      _
    $region15: #{tpu_custom_call.1} parent=1 // pred_check_branch
      %137 = sbr.rel (0) target = $region17
    $region16: #{tpu_custom_call.1} parent=1 // pred_region
      %s139 = ssub.s32 32, 32
      %140 = vsyncadd [#allocation5], %s139
      %s142 = sshll.u32 [#allocation4], 4
      %s143 = int_to_ptr.vmem [resolvable:$true] %s142
      %145 = dma.vmem_to_hbm [thread:$0]  %s143, 32, %s3, [#allocation5]
    $region17: #{tpu_custom_call.1} parent=1 // pred_fallthru
      _
    // Predicated region
    $region18: #{tpu_custom_call.1} parent=1 // pred_check
      _
    $region19: #{tpu_custom_call.1} parent=1 // pred_check_branch
      %147 = sbr.rel (0) target = $region21
    $region20: #{tpu_custom_call.1} parent=1 // pred_region
      %148 = dma.done [#allocation3], 128
    $region21: #{tpu_custom_call.1} parent=1 // pred_fallthru
      _
    // Predicated region
    $region22: #{tpu_custom_call.1} parent=1 // pred_check
      _
    $region23: #{tpu_custom_call.1} parent=1 // pred_check_branch
      %150 = sbr.rel (0) target = $region25
    $region24: #{tpu_custom_call.1} parent=1 // pred_region
      %151 = dma.done [#allocation5], 32
    $region25: #{tpu_custom_call.1} parent=1 // pred_fallthru
      _
    %152 = vsyncpa [#allocation3], 1
    %153 = vsyncpa [#allocation5], 1

</llo_original>
